<compile_context>
chip_gen: v7x
topology: tpu7x:2x2x1
jax: 0.10.0
libtpu: 0.0.40
codegen_flags: <defaults>
</compile_context>

<pallas_src>
import jax
import jax.numpy as jnp
from jax.experimental import pallas as pl
from jax.experimental.pallas import tpu as pltpu

_LANE = 128
_MIB = 1024 * 1024
_SUBLANE_BY_ITEMSIZE = {4: 8, 2: 16, 1: 32}


def _maxout_kernel(x_ref, o_ref):
    # x_ref block: (1, bg, P, bhw) -- pool axis is the (full-extent) second-
    # minor dim, HW lane-dense.  o_ref block: (1, bg, bhw).
    o_ref[...] = jnp.max(x_ref[...], axis=2)


def _vmem_capacity_bytes():
    """Physical per-core VMEM; conservative fallback = v7x's 64 MiB."""
    try:
        return int(pltpu.get_tpu_info().vmem_capacity_bytes)
    except Exception:
        return 64 * _MIB


def _pick_tiles(g, pool_size, hw, dtype, step_budget):
    """Choose (bg, bhw): lane-dense, VMEM-safe, dtype-aware sublane rounding."""
    itemsize = jnp.dtype(dtype).itemsize
    sub = _SUBLANE_BY_ITEMSIZE.get(itemsize, 8)
    # The pool axis sits in the sublane position of the input block, so its
    # VMEM footprint is padded to the dtype's sublane-packing multiple.
    padded_p = -(-pool_size // sub) * sub
    hw_pad = -(-hw // _LANE) * _LANE
    # Per (group-row x lane-element) VMEM bytes, input (padded) + output.
    row_cost = (padded_p + 1) * itemsize

    if sub * row_cost * hw_pad <= step_budget:
        # Full HW rows fit: each input block is one contiguous HBM span per
        # group (fewest, largest DMA chunks).
        bhw, lanes = hw, hw_pad
    else:
        # Otherwise take the largest 128-multiple lane tile such that a
        # minimum-height block fits; Pallas masks the HW edge block.
        lanes = max(_LANE, (step_budget // (sub * row_cost)) // _LANE * _LANE)
        lanes = min(lanes, hw_pad)
        bhw = min(lanes, hw)

    bg = max(1, step_budget // (row_cost * lanes))
    if bg >= g:
        bg = g                                  # full extent -> always legal
    else:
        bg = min(g, max(sub, (bg // sub) * sub))  # packed-sublane multiple
    return bg, bhw


def maxout(x: jax.Array, pool_size: int) -> jax.Array:
    """Maxout over the channel dimension of an (N, C, *spatial) tensor."""
    assert x.shape[1] % pool_size == 0, (
        f"Wrong input channel dim size ({x.shape[1]}) for Maxout({pool_size})"
    )
    n, c = x.shape[0], x.shape[1]
    spatial = x.shape[2:]
    g = c // pool_size
    hw = 1
    for s in spatial:
        hw *= s

    if hw < _LANE:
        # Degenerate lane extent (e.g. Maxout after a Linear layer, spatial
        # = ()): the lane-dense layout would use <1/128 of every vreg/store,
        # so plain XLA max is both simpler and faster here.
        # TODO(synk): Pallas path for tiny HW by re-tiling with channels in
        # the lane dim; and fuse the group-max into the producer's epilogue
        # to remove the pre-max HBM round-trip entirely.
        return jnp.max(x.reshape(n, g, pool_size, *spatial), axis=2)

    itemsize = jnp.dtype(x.dtype).itemsize
    vmem_cap = _vmem_capacity_bytes()
    # Explicit scoped-VMEM limit (default is only 16/32 MiB); keep headroom.
    vmem_limit = int(min(vmem_cap * 3 // 4, 64 * _MIB))
    # Per-step (single-buffer) budget: double-buffered footprint stays well
    # under the scoped limit on every generation.
    step_budget = min(14 * _MIB, vmem_limit // 3)

    bg, bhw = _pick_tiles(g, pool_size, hw, x.dtype, step_budget)

    # Free (contiguous) reshape: (N, C, *sp) -> (N, G, P, HW).
    x_r = x.reshape(n, g, pool_size, hw)

    extents = {"n": n, "g": pl.cdiv(g, bg), "h": pl.cdiv(hw, bhw)}
    # Largest extent leads the grid so v7x megacore sharding always has work
    # to split even when N == 1.  All axes are independent ("parallel").
    order = sorted(extents, key=lambda k: -extents[k])
    pos = {k: i for i, k in enumerate(order)}
    grid = tuple(extents[k] for k in order)

    def in_index(*gi):
        return (gi[pos["n"]], gi[pos["g"]], 0, gi[pos["h"]])

    def out_index(*gi):
        return (gi[pos["n"]], gi[pos["g"]], gi[pos["h"]])

    out = pl.pallas_call(
        _maxout_kernel,
        out_shape=jax.ShapeDtypeStruct((n, g, hw), x.dtype),
        grid_spec=pltpu.PrefetchScalarGridSpec(
            num_scalar_prefetch=0,
            grid=grid,
            in_specs=[pl.BlockSpec((1, bg, pool_size, bhw), in_index)],
            out_specs=pl.BlockSpec((1, bg, bhw), out_index),
        ),
        compiler_params=pltpu.CompilerParams(
            dimension_semantics=("parallel",) * len(grid),
            vmem_limit_bytes=vmem_limit,
        ),
        cost_estimate=pl.CostEstimate(
            flops=n * g * (pool_size - 1) * hw,
            transcendentals=0,
            bytes_accessed=(n * c * hw + n * g * hw) * itemsize,
        ),
    )(x_r)

    return out.reshape(n, g, *spatial)


if __name__ == "__main__":
    key = jax.random.PRNGKey(0)
    # Small NCHW input consistent with the module: batch=2, channels=4, 16x16.
    N, C, H, W = 2, 4, 16, 16
    pool_size = 2
    x = jax.random.normal(key, (N, C, H, W), dtype=jnp.float32)

    y = maxout(x, pool_size)
    y = jax.block_until_ready(y)

    # Reference check (plain JAX, same semantics as the PyTorch module).
    y_ref = jnp.max(x.reshape(N, C // pool_size, pool_size, H, W), axis=2)
    assert y.shape == (N, C // pool_size, H, W), y.shape
    assert jnp.allclose(y, y_ref), "Mismatch vs reference Maxout"

    print("KERNEL_OK")
</pallas_src>

<mosaic_0001>
module attributes {stable_mosaic.version = 11 : i64} {
  func.func @_maxout_kernel(%arg0: i32, %arg1: i32, %arg2: i32, %arg3: memref<1x2x2x256xf32, #tpu.memory_space<vmem>>, %arg4: memref<1x2x256xf32, #tpu.memory_space<vmem>>) attributes {dimension_semantics = [#tpu.dimension_semantics<parallel>, #tpu.dimension_semantics<parallel>, #tpu.dimension_semantics<parallel>], iteration_bounds = array<i64: 2, 1, 1>, scalar_prefetch = 0 : i64, scratch_operands = 0 : i64, tpu.core_type = #tpu.core_type<tc>, window_params = [{transform_indices = @transform_0, window_bounds = array<i64: 1, 2, 2, 256>}, {transform_indices = @transform_1, window_bounds = array<i64: 1, 2, 256>}]} {
    %c0 = arith.constant 0 : index
    %c0_0 = arith.constant 0 : index
    %c0_1 = arith.constant 0 : index
    %c0_2 = arith.constant 0 : index
    %0 = vector.load %arg3[%c0, %c0_0, %c0_1, %c0_2] : memref<1x2x2x256xf32, #tpu.memory_space<vmem>>, vector<1x2x2x256xf32>
    %cst = arith.constant dense<0xFF800000> : vector<1x2x256xf32>
    %1 = vector.multi_reduction <maximumf>, %0, %cst [2] : vector<1x2x2x256xf32> to vector<1x2x256xf32>
    %c0_3 = arith.constant 0 : index
    %c0_4 = arith.constant 0 : index
    %c0_5 = arith.constant 0 : index
    %2 = vector.load %arg4[%c0_3, %c0_4, %c0_5] : memref<1x2x256xf32, #tpu.memory_space<vmem>>, vector<1x2x256xf32>
    tpu.vector_store %arg4[%c0_3, %c0_4, %c0_5], %1 {strides = array<i32>} : memref<1x2x256xf32, #tpu.memory_space<vmem>>, vector<1x2x256xf32>,
    return
  }
  func.func @transform_0(%arg0: i32, %arg1: i32, %arg2: i32) -> (i32, i32, i32, i32) {
    %c0_i32 = arith.constant 0 : i32
    %c0_i32_0 = arith.constant 0 : i32
    return %arg0, %arg1, %c0_i32, %arg2 : i32, i32, i32, i32
  }
  func.func @transform_1(%arg0: i32, %arg1: i32, %arg2: i32) -> (i32, i32, i32) {
    %c0_i32 = arith.constant 0 : i32
    return %arg0, %arg1, %arg2 : i32, i32, i32
  }
}

</mosaic_0001>

<llo_original>
// kernel: tpu_custom_call.1
$region0: #{tpu_custom_call.1}
  #allocation0 [shape = 'u32[]', space=smem, size = 0x4, offset = 0x4, fixed_abs, tag = 'smem constant byte address 0x4 - core index']
  #allocation1 [shape = 'u32[144,128]{1,0:T(1,128)}', space=vmem, size = 0x12000, scoped, tag = 'internal scratch']
  %s0 = inlined_call_operand.hbm [shape: f32[2,2,2,256], index: 0, kind: input, shape index: {}]
  %s1 = inlined_call_operand.hbm [shape: f32[2,2,256], index: 1, kind: output, shape index: {}]
  %s2 = sld [smem:[#allocation0]]
  $region41: #{tpu_custom_call.1} parent=0
    _
  %s4 = ssub.s32 1, %s2
  %s5 = scalar_select 0, %s4, %s2
  $region1: #{tpu_custom_call.1} parent=0
    #allocation2 [shape = 'u8[8192]{0}', space=vmem, size = 0x2000, scoped, tag = 'input window, operand 0']
    #allocation3 [shape = 's32[2]{0}', space=sflag, size = 0x8, scoped, tag = 'scoped memory for tpu_custom_call.1']
    #allocation4 [shape = 's32[2]{0}', space=sflag, size = 0x8, scoped, tag = 'scoped memory for tpu_custom_call.1']
    #allocation5 [shape = 'u8[4096]{0}', space=vmem, size = 0x1000, scoped, tag = 'output window, operand 0']
    %6 = vsyncpa [#allocation3], 0
    %s7 = scalar_lea.sflag [#allocation3], 1
    %8 = vsyncpa %s7, 0
    %9 = vsyncpa [#allocation4], 0
    %s10 = scalar_lea.sflag [#allocation4], 1
    %11 = vsyncpa %s10, 0
    loop: start=0, step=1, limit=4
    $region2: #{tpu_custom_call.1} parent=1 // loop_pre_header
      _
    $region3: #{tpu_custom_call.1} parent=1 // loop_header
      %s13 = sphi 0, %s17
      %p14 = scmp.ge.s32.totalorder %s13, 4
      %s20 = sphi 0, %s39
      %s21 = sphi 0, %s35
      %s22 = sphi 0, %s31
      %s23 = sphi 0, %s20
      %s24 = sphi 0, %s21
      %s25 = sphi 0, %s22
      %s26 = sphi 0, %s23
      %s27 = sphi 0, %s24
      %s28 = sphi 0, %s25
      %s46 = sphi 0, %s48
      %s49 = sphi 0, %s46
      %s50 = sphi 0, %s49
      %s66 = sphi 0, %s50
      %s76 = sphi 0, %s78
      %s79 = sphi 0, %s76
      %s80 = sphi 0, %s79
      %s96 = sphi 0, %s80
    $region4: #{tpu_custom_call.1} parent=1 // loop_header_branch
      %16 = sbr.rel (%p14) target = $region8
    $region5: #{tpu_custom_call.1} parent=1 // loop_body
      %s18 = ssub.s32 %s13, 1
      %s19 = ssub.s32 %s13, 2
      %s29 = sadd.s32 1, %s22
      %p30 = scmp.ge.s32.totalorder %s29, 1
      %s31 = scalar_select %p30, 0, %s29
      %s32 = sadd.s32 1, %s21
      %s33 = scalar_select %p30, %s32, %s21
      %p34 = scmp.ge.s32.totalorder %s33, 1
      %s35 = scalar_select %p34, 0, %s33
      %s36 = sadd.s32 1, %s20
      %s37 = scalar_select %p34, %s36, %s20
      %p38 = scmp.ge.s32.totalorder %s37, 2
      %s39 = scalar_select %p38, 0, %s37
      %s40 = ssub.s32 %s20, %s39
      %s41 = ssub.s32 %s21, %s35
      %s42 = sor.u32 %s40, %s41
      %s43 = ssub.s32 %s22, %s31
      %s44 = sor.u32 %s42, %s43
      %p45 = scmp.eq.s32.totalorder %s44, 0
      %s47 = sadd.s32 %s46, 1
      %s48 = scalar_select %p45, %s46, %s47
      %p51 = pneg %p45
      %p52 = scmp.eq.s32.totalorder %s13, 1
      %p53 = por %p51, %p52
      %p54 = scmp.ne.s32.totalorder %s46, %s49
      %p55 = scmp.eq.s32.totalorder %s13, 0
      %p56 = por %p54, %p55
      %p57 = scmp.ne.s32.totalorder %s46, %s49
      %p58 = scmp.eq.s32.totalorder %s18, 1
      %p59 = por %p57, %p58
      %p60 = scmp.ne.s32.totalorder %s49, %s50
      %p61 = scmp.eq.s32.totalorder %s18, 0
      %p62 = por %p60, %p61
      %p63 = scmp.ne.s32.totalorder %s49, %s50
      %p64 = scmp.eq.s32.totalorder %s19, 1
      %p65 = por %p63, %p64
      %p67 = scmp.ne.s32.totalorder %s50, %s66
      %p68 = scmp.eq.s32.totalorder %s19, 0
      %p69 = por %p67, %p68
      %s70 = ssub.s32 %s20, %s39
      %s71 = ssub.s32 %s21, %s35
      %s72 = sor.u32 %s70, %s71
      %s73 = ssub.s32 %s22, %s31
      %s74 = sor.u32 %s72, %s73
      %p75 = scmp.eq.s32.totalorder %s74, 0
      %s77 = sadd.s32 %s76, 1
      %s78 = scalar_select %p75, %s76, %s77
      %p81 = pneg %p75
      %p82 = scmp.eq.s32.totalorder %s13, 1
      %p83 = por %p81, %p82
      %p84 = scmp.ne.s32.totalorder %s76, %s79
      %p85 = scmp.eq.s32.totalorder %s13, 0
      %p86 = por %p84, %p85
      %p87 = scmp.ne.s32.totalorder %s76, %s79
      %p88 = scmp.eq.s32.totalorder %s18, 1
      %p89 = por %p87, %p88
      %p90 = scmp.ne.s32.totalorder %s79, %s80
      %p91 = scmp.eq.s32.totalorder %s18, 0
      %p92 = por %p90, %p91
      %p93 = scmp.ne.s32.totalorder %s79, %s80
      %p94 = scmp.eq.s32.totalorder %s19, 1
      %p95 = por %p93, %p94
      %p97 = scmp.ne.s32.totalorder %s80, %s96
      %p98 = scmp.eq.s32.totalorder %s19, 0
      %p99 = por %p97, %p98
      %p100 = scmp.le.s32.totalorder 1, %s13
      %p101 = scmp.lt.s32.totalorder %s13, 3
      %p102 = pnand %p100, %p101
      %p103 = pneg %p102
      // Predicated region
      $region9: #{tpu_custom_call.1} parent=5 // pred_check
        _
      $region10: #{tpu_custom_call.1} parent=5 // pred_check_branch
        %105 = sbr.rel (%p102) target = $region12
      $region11: #{tpu_custom_call.1} parent=5 // pred_region
        %s106 = ssub.s32 %s13, 1
      $region12: #{tpu_custom_call.1} parent=5 // pred_fallthru
        _
      %p107 = scmp.lt.s32.totalorder %s13, 2
      // Predicated region
      $region13: #{tpu_custom_call.1} parent=5 // pred_check
        %p108 = pneg %p107
      $region14: #{tpu_custom_call.1} parent=5 // pred_check_branch
        %110 = sbr.rel (%p108) target = $region16
      $region15: #{tpu_custom_call.1} parent=5 // pred_region
        // Predicated region
        $region17: #{tpu_custom_call.1} parent=15 // pred_check
          %p111 = pneg %p56
        $region18: #{tpu_custom_call.1} parent=15 // pred_check_branch
          %113 = sbr.rel (%p111) target = $region20
        $region19: #{tpu_custom_call.1} parent=15 // pred_region
          %s114 = sand.u32 %s46, 1
          %s115 = scalar_lea.sflag [#allocation3], %s114
          %s116 = sand.u32 %s46, 1
          %s117 = smul.addr %s116, 8
          %s118 = scalar_lea.vmem [#allocation2], %s117
          %s119 = smul.u32 2, %s21
          %s120 = smul.u32 2, %s22
          %s122 = ssub.s32 128, 128
          %123 = vsyncadd %s115, %s122
          %s124 = smul.addr %s119, 2
          %s125 = sadd.s32 %s120, %s124
          %s126 = smul.addr %s20, 4
          %s127 = sadd.s32 %s125, %s126
          %s128 = smul.addr %s127, 32
          %s129 = scalar_lea.hbm %s0, %s128
          %s130 = sshll.u32 %s118, 4
          %s131 = int_to_ptr.vmem [resolvable:$true] %s130
          %136 = dma.hbm_to_vmem [thread:$0]  %s129, 128, %s131, %s115, 64, 64, 4
        $region20: #{tpu_custom_call.1} parent=15 // pred_fallthru
          _
      $region16: #{tpu_custom_call.1} parent=5 // pred_fallthru
        _
      %p137 = scmp.le.s32.totalorder 1, %s13
      %p138 = scmp.lt.s32.totalorder %s13, 3
      %p139 = pnand %p137, %p138
      %p140 = pneg %p139
      // Predicated region
      $region21: #{tpu_custom_call.1} parent=5 // pred_check
        _
      $region22: #{tpu_custom_call.1} parent=5 // pred_check_branch
        %142 = sbr.rel (%p139) target = $region24
      $region23: #{tpu_custom_call.1} parent=5 // pred_region
        %s143 = ssub.s32 %s13, 1
        %s144 = sand.u32 %s49, 1
        %s145 = scalar_lea.sflag [#allocation3], %s144
        %s146 = sand.u32 %s49, 1
        %s147 = smul.addr %s146, 8
        %s148 = scalar_lea.vmem [#allocation2], %s147
        // Predicated region
        $region25: #{tpu_custom_call.1} parent=23 // pred_check
          %p149 = pneg %p62
        $region26: #{tpu_custom_call.1} parent=23 // pred_check_branch
          %151 = sbr.rel (%p149) target = $region28
        $region27: #{tpu_custom_call.1} parent=23 // pred_region
          %152 = dma.done %s145, 128
        $region28: #{tpu_custom_call.1} parent=23 // pred_fallthru
          _
        %s153 = sand.u32 %s49, 1
        %s154 = scalar_lea.sflag [#allocation3], %s153
        %s155 = sand.u32 %s49, 1
        %s156 = smul.addr %s155, 8
        %s157 = scalar_lea.vmem [#allocation2], %s156
        %p158 = pneg %p62
        %p159 = pneg %p59
        %p160 = pneg %p92
        %p161 = pneg %p89
        %s162 = sand.u32 %s79, 1
        %s163 = scalar_lea.sflag [#allocation4], %s162
        %s164 = sand.u32 %s79, 1
        %s165 = smul.addr %s164, 4
        %s166 = scalar_lea.vmem [#allocation5], %s165
        %s167 = smul.u32 2, %s24
        %s168 = smul.u32 2, %s25
        %s169 = smul.u32 2, %s25
        %v170 = vld [vmem:[%s148] sm:$0xf]
        %v171 = vld [vmem:[%s148 + $0x4] sm:$0xf]
        %v175 = vunpack.c.l.s4 1983009808
        %v176 = vunpack.c.0.s8 %v175
        %v177 = vlaneseq
        %v178 = vshrl.u32 %v177, 7
        %v179 = vsub.s32 %v176, %v178
        %v180 = vrot.slane %v170, %v179
        %v181 = vcombine.high %v180, %v180
        %v183 = vunpack.c.l.s4 1983009808
        %v184 = vunpack.c.0.s8 %v183
        %v185 = vlaneseq
        %v186 = vshrl.u32 %v185, 7
        %v187 = vsub.s32 %v184, %v186
        %v188 = vrot.slane %v171, %v187
        %v189 = vcombine.high %v188, %v188
        %vm194 = vcmask 1041408
        %v195 = vsel %vm194, %v180, -inf
        %v196 = vrot.slane %v195, 4
        %v197 = vmax.f32 %v195, %v196
        %v198 = vrot.slane %v197, 2
        %v199 = vmax.f32 %v197, %v198
        %v200 = vrot.slane %v199, 1
        %v201 = vmax.f32 %v199, %v200
        %v202 = vsel %vm194, %v181, -inf
        %v203 = vrot.slane %v202, 4
        %v204 = vmax.f32 %v202, %v203
        %v205 = vrot.slane %v204, 2
        %v206 = vmax.f32 %v204, %v205
        %v207 = vrot.slane %v206, 1
        %v208 = vmax.f32 %v206, %v207
        %v209 = vsel %vm194, %v188, -inf
        %v210 = vrot.slane %v209, 4
        %v211 = vmax.f32 %v209, %v210
        %v212 = vrot.slane %v211, 2
        %v213 = vmax.f32 %v211, %v212
        %v214 = vrot.slane %v213, 1
        %v215 = vmax.f32 %v213, %v214
        %v216 = vsel %vm194, %v189, -inf
        %v217 = vrot.slane %v216, 4
        %v218 = vmax.f32 %v216, %v217
        %v219 = vrot.slane %v218, 2
        %v220 = vmax.f32 %v218, %v219
        %v221 = vrot.slane %v220, 1
        %v222 = vmax.f32 %v220, %v221
        %v227 = vcombine.low %v201, %v208
        %v229 = vunpack.c.l.s4 1983009808
        %v230 = vunpack.c.0.s8 %v229
        %v231 = vlaneseq
        %v232 = vshrl.u32 %v231, 7
        %v233 = vsub.s32 %v230, %v232
        %v234 = vrot.slane %v227, %v233
        %v235 = vcombine.low %v215, %v222
        %v237 = vunpack.c.l.s4 1983009808
        %v238 = vunpack.c.0.s8 %v237
        %v239 = vlaneseq
        %v240 = vshrl.u32 %v239, 7
        %v241 = vsub.s32 %v238, %v240
        %v242 = vrot.slane %v235, %v241
        %vm243 = vcmask 1044484
        %v244 = vsel %vm243, %v234, %v234
        %vm245 = vcmask 1046534
        %v246 = vsel %vm245, %v234, %v244
        %v247 = vrot.slane %v242, 7
        %vm248 = vcmask 1041409
        %v249 = vsel %vm248, %v247, %v246
        %vm250 = vcmask 1043459
        %v251 = vsel %vm250, %v247, %v249
        %vm252 = vcmask 1045509
        %v253 = vsel %vm252, %v247, %v251
        %vm254 = vcmask 1047559
        %v255 = vsel %vm254, %v247, %v253
        %257 = vst [vmem:[%s166] sm:$0xf] %v255
        %s258 = sand.u32 %s79, 1
        %s259 = scalar_lea.sflag [#allocation4], %s258
        %s260 = sand.u32 %s79, 1
        %s261 = smul.addr %s260, 4
        %s262 = scalar_lea.vmem [#allocation5], %s261
        // Predicated region
        $region29: #{tpu_custom_call.1} parent=23 // pred_check
          %p263 = pneg %p89
        $region30: #{tpu_custom_call.1} parent=23 // pred_check_branch
          %265 = sbr.rel (%p263) target = $region32
        $region31: #{tpu_custom_call.1} parent=23 // pred_region
          %s266 = smul.u32 2, %s25
          %s268 = ssub.s32 64, 64
          %269 = vsyncadd %s259, %s268
          %s270 = smul.addr %s24, 2
          %s271 = sadd.s32 %s266, %s270
          %s272 = smul.addr %s23, 2
          %s273 = sadd.s32 %s271, %s272
          %s274 = smul.addr %s273, 32
          %s275 = scalar_lea.hbm %s1, %s274
          %s277 = sshll.u32 %s262, 4
          %s278 = int_to_ptr.vmem [resolvable:$true] %s277
          %280 = dma.vmem_to_hbm [thread:$0]  %s278, 64, %s275, %s259
        $region32: #{tpu_custom_call.1} parent=23 // pred_fallthru
          _
      $region24: #{tpu_custom_call.1} parent=5 // pred_fallthru
        _
      %p281 = scmp.le.s32.totalorder 2, %s13
      // Predicated region
      $region33: #{tpu_custom_call.1} parent=5 // pred_check
        %p282 = pneg %p281
      $region34: #{tpu_custom_call.1} parent=5 // pred_check_branch
        %284 = sbr.rel (%p282) target = $region36
      $region35: #{tpu_custom_call.1} parent=5 // pred_region
        %s285 = ssub.s32 %s13, 2
        // Predicated region
        $region37: #{tpu_custom_call.1} parent=35 // pred_check
          %p286 = pneg %p95
        $region38: #{tpu_custom_call.1} parent=35 // pred_check_branch
          %288 = sbr.rel (%p286) target = $region40
        $region39: #{tpu_custom_call.1} parent=35 // pred_region
          %s289 = sand.u32 %s80, 1
          %s290 = scalar_lea.sflag [#allocation4], %s289
          %s291 = sand.u32 %s80, 1
          %s292 = smul.addr %s291, 4
          %s293 = scalar_lea.vmem [#allocation5], %s292
          %294 = dma.done %s290, 64
        $region40: #{tpu_custom_call.1} parent=35 // pred_fallthru
          _
      $region36: #{tpu_custom_call.1} parent=5 // pred_fallthru
        _
    $region6: #{tpu_custom_call.1} parent=1 // loop_footer
      %s17 = sadd.s32 1, %s13
    $region7: #{tpu_custom_call.1} parent=1 // loop_footer_branch
      %12 = sbr.rel target = $region3
    $region8: #{tpu_custom_call.1} parent=1 // loop_exit
      _
    %295 = vsyncpa [#allocation3], 1
    %s296 = scalar_lea.sflag [#allocation3], 1
    %297 = vsyncpa %s296, 1
    %298 = vsyncpa [#allocation4], 1
    %s299 = scalar_lea.sflag [#allocation4], 1
    %300 = vsyncpa %s299, 1

</llo_original>
